<compile_context>
chip_gen: v7x
topology: tpu7x:2x2x1
jax: 0.10.0
libtpu: 0.0.40
codegen_flags: <defaults>
</compile_context>

<pallas_src>
import jax
import jax.numpy as jnp
from jax.experimental import pallas as pl
from jax.experimental.pallas import tpu as pltpu


def _linear_kernel(x_ref, w_ref, b_ref, o_ref):
    # x_ref: (TM, W) VMEM   w_ref: (P, W) VMEM   b_ref: (1,) SMEM   o_ref: (P, TM) VMEM
    # Contract the shared lane axis of both operands (w @ x^T): the result comes out
    # lane-dense (P, TM) -> wide unmasked stores, no transpose needed in-kernel.
    acc = jax.lax.dot_general(
        w_ref[...], x_ref[...],
        dimension_numbers=(((1,), (1,)), ((), ())),
        preferred_element_type=jnp.float32,
    )  # (P, TM) f32
    o_ref[...] = (acc + b_ref[0]).astype(o_ref.dtype)


def sequence_predictor_forward(x, weight, bias, *, block_rows=32768):
    """torch.nn.Linear(F, 1) forward. x: (..., F); weight: (1, F); bias: (1,).

    Returns (..., 1), matching torch.nn.Linear(F, 1).
    """
    F = x.shape[-1]
    lead = x.shape[:-1]
    x_flat = x.reshape(-1, F)          # (M, F), rows contiguous in HBM
    M = x_flat.shape[0]

    # Pack p = 128 // F consecutive rows into one 128-lane row when F divides 128
    # (free reshape of contiguous data). Otherwise fall back to width = F rows.
    p = 128 // F if (F <= 128 and 128 % F == 0) else 1

    w_vec = weight.reshape(-1).astype(x.dtype)       # (F,)
    b = bias.reshape(1).astype(jnp.float32)

    if p > 1:
        pad_rows = (-M) % p
        if pad_rows:
            # Rare edge case (M not a multiple of p): <= p-1 logical rows of padding
            # (XLA still copies x here; typical batch*seq is a multiple of p).
            x_flat = jnp.pad(x_flat, ((0, pad_rows), (0, 0)))
        width = p * F                                 # == 128 lanes, dense
        x_in = x_flat.reshape(-1, width)              # (M/p, 128)
        # w_in[j, j*F:(j+1)*F] = w  -> row j selects original sub-row j of a packed row.
        eye = jnp.eye(p, dtype=x.dtype)
        w_in = (eye[:, :, None] * w_vec[None, None, :]).reshape(p, width)
    else:
        width = F
        x_in = x_flat
        w_in = w_vec.reshape(1, F)

    m_rows = x_in.shape[0]

    # Row tile: large enough to amortize per-grid-step overhead; multiple of 128 so
    # multi-tile blocks are lane-dense and (8,128)-legal; a single full-extent block
    # for small inputs (block == full array dims is always legal).
    target_rows = max(128, (block_rows // p) // 128 * 128)
    if m_rows <= target_rows:
        tm = m_rows
        num_tiles = 1
    else:
        tm = target_rows
        num_tiles = pl.cdiv(m_rows, tm)
    # Only the tiny output is logically padded; no full-array pad of x. The ragged
    # last input block reads unspecified tail rows whose outputs are sliced off below.
    m_rows_out = num_tiles * tm

    flops = 2 * m_rows * width * p
    bytes_accessed = (x_in.size * x_in.dtype.itemsize
                      + m_rows_out * p * jnp.dtype(x.dtype).itemsize
                      + w_in.size * w_in.dtype.itemsize)

    out = pl.pallas_call(
        _linear_kernel,
        out_shape=jax.ShapeDtypeStruct((p, m_rows_out), x.dtype),
        grid_spec=pltpu.PrefetchScalarGridSpec(
            num_scalar_prefetch=0,
            grid=(num_tiles,),
            in_specs=[
                pl.BlockSpec((tm, width), lambda i: (i, 0)),           # streamed X tiles
                pl.BlockSpec((p, width), lambda i: (0, 0)),            # weight (resident)
                pl.BlockSpec(memory_space=pltpu.MemorySpace.SMEM),     # bias scalar in SMEM
            ],
            out_specs=pl.BlockSpec((p, tm), lambda i: (0, i)),         # lane-dense out tile
        ),
        compiler_params=pltpu.CompilerParams(
            dimension_semantics=("parallel",),      # megacore sharding of row tiles
            vmem_limit_bytes=32 << 20,              # headroom on v5e's 16 MiB default
        ),
        cost_estimate=pl.CostEstimate(
            flops=int(flops), transcendentals=0, bytes_accessed=int(bytes_accessed)),
    )(x_in, w_in, b)

    # out[j, r] = y[p*r + j]; drop padded tail columns / rows, restore leading dims.
    y = out[:, :m_rows].T.reshape(-1)[:M]
    return y.reshape(*lead, 1)


if __name__ == "__main__":
    key = jax.random.PRNGKey(0)
    k_x, k_w, k_b, k_x2 = jax.random.split(key, 4)

    batch, seq, num_features = 2, 8, 32

    # Deterministic PyTorch-style init: U(-1/sqrt(F), 1/sqrt(F))
    bound = 1.0 / (num_features ** 0.5)
    weight = jax.random.uniform(k_w, (1, num_features), jnp.float32, -bound, bound)
    bias = jax.random.uniform(k_b, (1,), jnp.float32, -bound, bound)

    x = jax.random.normal(k_x, (batch, seq, num_features), jnp.float32)

    out = sequence_predictor_forward(x, weight, bias)
    out = jax.block_until_ready(out)

    # Sanity check against plain JAX reference (matches torch.nn.Linear).
    ref = x @ weight.T + bias
    assert out.shape == (batch, seq, 1), out.shape
    assert jnp.allclose(out, ref, atol=1e-5, rtol=1e-5), "mismatch vs reference"

    # Also exercise the multi-tile streaming path (small shapes, tile override).
    x2 = jax.random.normal(k_x2, (4, 256, num_features), jnp.float32)
    out2 = jax.block_until_ready(
        sequence_predictor_forward(x2, weight, bias, block_rows=512))
    ref2 = x2 @ weight.T + bias
    assert jnp.allclose(out2, ref2, atol=1e-5, rtol=1e-5), "mismatch (multi-tile)"

    print("KERNEL_OK")
</pallas_src>

<mosaic_0001>
module attributes {stable_mosaic.version = 11 : i64} {
  func.func @_linear_kernel(%arg0: i32, %arg1: memref<4x128xf32, #tpu.memory_space<vmem>>, %arg2: memref<4x128xf32, #tpu.memory_space<vmem>>, %arg3: memref<1xf32, #tpu.memory_space<smem>>, %arg4: memref<4x4xf32, #tpu.memory_space<vmem>>) attributes {dimension_semantics = [#tpu.dimension_semantics<parallel>], iteration_bounds = array<i64: 1>, scalar_prefetch = 0 : i64, scratch_operands = 0 : i64, tpu.core_type = #tpu.core_type<tc>, window_params = [{transform_indices = @transform_0, window_bounds = array<i64: 4, 128>}, {pipeline_mode = #tpu.pipeline_mode<synchronous>, transform_indices = @transform_1, window_bounds = array<i64: 4, 128>}, {transform_indices = @transform_2, window_bounds = array<i64: 1>}, {transform_indices = @transform_3, window_bounds = array<i64: 4, 4>}]} {
    %c0 = arith.constant 0 : index
    %c0_0 = arith.constant 0 : index
    %0 = vector.load %arg2[%c0, %c0_0] : memref<4x128xf32, #tpu.memory_space<vmem>>, vector<4x128xf32>
    %c0_1 = arith.constant 0 : index
    %c0_2 = arith.constant 0 : index
    %1 = vector.load %arg1[%c0_1, %c0_2] : memref<4x128xf32, #tpu.memory_space<vmem>>, vector<4x128xf32>
    %cst = arith.constant dense<0.000000e+00> : vector<4x4xf32>
    %2 = tpu.matmul %0, %1, %cst {dimension_numbers = #tpu.dot_dimension_numbers<[1], [1], [0], [0], [0, 0, 1, 0], [], []>} : vector<4x128xf32>, vector<4x128xf32>, vector<4x4xf32> -> vector<4x4xf32>
    %c0_3 = arith.constant 0 : index
    %3 = memref.load %arg3[%c0_3] : memref<1xf32, #tpu.memory_space<smem>>
    %4 = vector.broadcast %3 : f32 to vector<4x4xf32>
    %5 = arith.addf %2, %4 : vector<4x4xf32>
    %c0_4 = arith.constant 0 : index
    %c0_5 = arith.constant 0 : index
    %6 = vector.load %arg4[%c0_4, %c0_5] : memref<4x4xf32, #tpu.memory_space<vmem>>, vector<4x4xf32>
    tpu.vector_store %arg4[%c0_4, %c0_5], %5 {strides = array<i32>} : memref<4x4xf32, #tpu.memory_space<vmem>>, vector<4x4xf32>,
    return
  }
  func.func @transform_0(%arg0: i32) -> (i32, i32) {
    %c0_i32 = arith.constant 0 : i32
    %c0_i32_0 = arith.constant 0 : i32
    return %arg0, %c0_i32 : i32, i32
  }
  func.func @transform_1(%arg0: i32) -> (i32, i32) {
    %c0_i32 = arith.constant 0 : i32
    %c0_i32_0 = arith.constant 0 : i32
    %c0_i32_1 = arith.constant 0 : i32
    return %c0_i32, %c0_i32_0 : i32, i32
  }
  func.func @transform_2(%arg0: i32) -> i32 {
    %c0_i32 = arith.constant 0 : i32
    %c0_i32_0 = arith.constant 0 : i32
    return %c0_i32 : i32
  }
  func.func @transform_3(%arg0: i32) -> (i32, i32) {
    %c0_i32 = arith.constant 0 : i32
    %c0_i32_0 = arith.constant 0 : i32
    return %c0_i32, %arg0 : i32, i32
  }
}

</mosaic_0001>

<llo_original>
// kernel: tpu_custom_call.1
$region0: #{tpu_custom_call.1}
  #allocation0 [shape = 'u32[]', space=smem, size = 0x4, offset = 0x4, fixed_abs, tag = 'smem constant byte address 0x4 - core index']
  #allocation1 [shape = 'u32[144,128]{1,0:T(1,128)}', space=vmem, size = 0x12000, scoped, tag = 'internal scratch']
  #allocation2 [shape = 'f32[1]{0:T(128)S(6)}', space=smem, size = 0x200, scoped, tag = 'scoped memory for tpu_custom_call.1']
  %s0 = inlined_call_operand.hbm [shape: f32[4,128], index: 0, kind: input, shape index: {}]
  %s1 = inlined_call_operand.vmem [shape: f32[4,128], index: 1, kind: input, shape index: {}]
  %s2 = inlined_call_operand.<no memory space> [shape: f32[1], index: 2, kind: input, shape index: {}]
  %s3 = inlined_call_operand.hbm [shape: f32[4,4], index: 3, kind: output, shape index: {}]
  %s4 = sld [smem:[#allocation0]]
  $region26: #{tpu_custom_call.1} parent=0
    _
  %s6 = ssub.s32 1, %s4
  %s7 = scalar_select 0, %s6, %s4
  %8 = sst [smem:[#allocation2]] %s2
  $region1: #{tpu_custom_call.1} parent=0
    #allocation3 [shape = 'u8[2048]{0}', space=vmem, size = 0x800, scoped, tag = 'input window, operand 0, single buffered']
    #allocation4 [shape = 's32[1]{0}', space=sflag, size = 0x4, scoped, tag = 'scoped memory for tpu_custom_call.1']
    #allocation5 [shape = 's32[1]{0}', space=sflag, size = 0x4, scoped, tag = 'scoped memory for tpu_custom_call.1']
    #allocation6 [shape = 'u8[2048]{0}', space=vmem, size = 0x800, scoped, tag = 'output window, operand 0, single buffered']
    %9 = vsyncpa [#allocation4], 0
    %10 = vsyncpa [#allocation5], 0
    // Predicated region
    $region2: #{tpu_custom_call.1} parent=1 // pred_check
      _
    $region3: #{tpu_custom_call.1} parent=1 // pred_check_branch
      %12 = sbr.rel (0) target = $region5
    $region4: #{tpu_custom_call.1} parent=1 // pred_region
      %s14 = ssub.s32 64, 64
      %15 = vsyncadd [#allocation4], %s14
      %s17 = sshll.u32 [#allocation3], 4
      %s18 = int_to_ptr.vmem [resolvable:$true] %s17
      %20 = dma.hbm_to_vmem [thread:$0]  %s0, 64, %s18, [#allocation4]
    $region5: #{tpu_custom_call.1} parent=1 // pred_fallthru
      _
    // Predicated region
    $region6: #{tpu_custom_call.1} parent=1 // pred_check
      _
    $region7: #{tpu_custom_call.1} parent=1 // pred_check_branch
      %22 = sbr.rel (0) target = $region9
    $region8: #{tpu_custom_call.1} parent=1 // pred_region
      _
    $region9: #{tpu_custom_call.1} parent=1 // pred_fallthru
      _
    // Predicated region
    $region10: #{tpu_custom_call.1} parent=1 // pred_check
      _
    $region11: #{tpu_custom_call.1} parent=1 // pred_check_branch
      %24 = sbr.rel (0) target = $region13
    $region12: #{tpu_custom_call.1} parent=1 // pred_region
      _
    $region13: #{tpu_custom_call.1} parent=1 // pred_fallthru
      _
    // Predicated region
    $region14: #{tpu_custom_call.1} parent=1 // pred_check
      _
    $region15: #{tpu_custom_call.1} parent=1 // pred_check_branch
      %26 = sbr.rel (0) target = $region17
    $region16: #{tpu_custom_call.1} parent=1 // pred_region
      %27 = dma.done [#allocation4], 64
    $region17: #{tpu_custom_call.1} parent=1 // pred_fallthru
      _
    %v28 = vld [vmem:[%s1] sm:$0xf]
    %v29 = vld [vmem:[#allocation3] sm:$0xf]
    %s30 = sld [smem:[#allocation2]]
    %v31 = vstv %s30
    %32 = vmatprep.subr.mxu0 0.0
    %33 = vmatpush1.xpose.msra.mxu0 %v29
    %34 = vmatprep.subr.mxu0 0.0
    %35 = vmatpush1.xpose.msra.mxu0 0.0
    %36 = vmatprep.subr.mxu0 0.0
    %37 = vmatpush1.xpose.msra.mxu0 0.0
    %38 = vmatprep.subr.mxu0 0.0
    %39 = vmatpush1.xpose.msra.mxu0 0.0
    %40 = vmatprep.subr.mxu0 0.0
    %41 = vmatpush1.xpose.msra.mxu0 0.0
    %42 = vmatprep.subr.mxu0 0.0
    %43 = vmatpush1.xpose.msra.mxu0 0.0
    %44 = vmatprep.subr.mxu0 0.0
    %45 = vmatpush1.xpose.msra.mxu0 0.0
    %46 = vmatprep.subr.mxu0 0.0
    %47 = vmatpush1.xpose.msra.mxu0 0.0
    %48 = vmatprep.subr.mxu0 0.0
    %49 = vmatpush1.xpose.msra.mxu0 0.0
    %50 = vmatprep.subr.mxu0 0.0
    %51 = vmatpush1.xpose.msra.mxu0 0.0
    %52 = vmatprep.subr.mxu0 0.0
    %53 = vmatpush1.xpose.msra.mxu0 0.0
    %54 = vmatprep.subr.mxu0 0.0
    %55 = vmatpush1.xpose.msra.mxu0 0.0
    %56 = vmatprep.subr.mxu0 0.0
    %57 = vmatpush1.xpose.msra.mxu0 0.0
    %58 = vmatprep.subr.mxu0 0.0
    %59 = vmatpush1.xpose.msra.mxu0 0.0
    %60 = vmatprep.subr.mxu0 0.0
    %61 = vmatpush1.xpose.msra.mxu0 0.0
    %62 = vmatprep.subr.mxu0 0.0
    %63 = vmatpush1.xpose.msra.mxu0 0.0
    %64 = vmatprep.subr.mxu0 0.0
    %65 = vmatpush1.xpose.msra.mxu0 0.0
    %66 = vmatprep.subr.mxu0 0.0
    %67 = vmatpush1.xpose.msra.mxu0 0.0
    %68 = vmatprep.subr.mxu0 0.0
    %69 = vmatpush1.xpose.msra.mxu0 0.0
    %70 = vmatprep.subr.mxu0 0.0
    %71 = vmatpush1.xpose.msra.mxu0 0.0
    %72 = vmatprep.subr.mxu0 0.0
    %73 = vmatpush1.xpose.msra.mxu0 0.0
    %74 = vmatprep.subr.mxu0 0.0
    %75 = vmatpush1.xpose.msra.mxu0 0.0
    %76 = vmatprep.subr.mxu0 0.0
    %77 = vmatpush1.xpose.msra.mxu0 0.0
    %78 = vmatprep.subr.mxu0 0.0
    %79 = vmatpush1.xpose.msra.mxu0 0.0
    %80 = vmatprep.subr.mxu0 0.0
    %81 = vmatpush1.xpose.msra.mxu0 0.0
    %82 = vmatprep.subr.mxu0 0.0
    %83 = vmatpush1.xpose.msra.mxu0 0.0
    %84 = vmatprep.subr.mxu0 0.0
    %85 = vmatpush1.xpose.msra.mxu0 0.0
    %86 = vmatprep.subr.mxu0 0.0
    %87 = vmatpush1.xpose.msra.mxu0 0.0
    %88 = vmatprep.subr.mxu0 0.0
    %89 = vmatpush1.xpose.msra.mxu0 0.0
    %90 = vmatprep.subr.mxu0 0.0
    %91 = vmatpush1.xpose.msra.mxu0 0.0
    %92 = vmatprep.subr.mxu0 0.0
    %93 = vmatpush1.xpose.msra.mxu0 0.0
    %94 = vmatprep.subr.mxu0 0.0
    %95 = vmatpush1.xpose.msra.mxu0 0.0
    %96 = vmatprep.mubr.f32.mxu0 0.0
    %97 = vmatmul.mubr.f32.gmra.mrb[0].mxu0 %v28
    %v98 = vpop.f32.mrb[0].mxu0
    %v99 = vadd.f32 %v31, %v98
    %v100 = vpop.f32.mrb[0].mxu0
    %101 = vdwg.mxu0
    %vm102 = vcmask 27648
    %103 = vst.msk [vmem:[#allocation6] sm:$0xf] %vm102, %v99
    // Predicated region
    $region18: #{tpu_custom_call.1} parent=1 // pred_check
      _
    $region19: #{tpu_custom_call.1} parent=1 // pred_check_branch
      %105 = sbr.rel (0) target = $region21
    $region20: #{tpu_custom_call.1} parent=1 // pred_region
      %s107 = ssub.s32 64, 64
      %108 = vsyncadd [#allocation5], %s107
      %s110 = sshll.u32 [#allocation6], 4
      %s111 = int_to_ptr.vmem [resolvable:$true] %s110
      %113 = dma.vmem_to_hbm [thread:$0]  %s111, 64, %s3, [#allocation5]
    $region21: #{tpu_custom_call.1} parent=1 // pred_fallthru
      _
    // Predicated region
    $region22: #{tpu_custom_call.1} parent=1 // pred_check
      _
    $region23: #{tpu_custom_call.1} parent=1 // pred_check_branch
      %115 = sbr.rel (0) target = $region25
    $region24: #{tpu_custom_call.1} parent=1 // pred_region
      %116 = dma.done [#allocation5], 64
    $region25: #{tpu_custom_call.1} parent=1 // pred_fallthru
      _
    %117 = vsyncpa [#allocation4], 1
    %118 = vsyncpa [#allocation5], 1

</llo_original>
